<compile_context>
chip_gen: v6e
topology: v6e:2x2x1
jax: 0.10.0
libtpu: 0.0.40
codegen_flags: <defaults>
</compile_context>

<pallas_src>
import jax
import jax.numpy as jnp
from jax.experimental import pallas as pl
from jax.experimental.pallas import tpu as pltpu


_TARGET_TILE_BYTES = 2 * 1024 * 1024  # ~2 MiB per streamed tile buffer


def _tile_sizes(batch, cols, itemsize):
    """Pick (TB, TC) for a (batch, cols) element-wise streaming pass.

    Layout rules honored: TC is a multiple of 128 or the full `cols`; TB is a
    multiple of the sublane pack (8 f32 / 16 bf16 / 32 int8) or the full
    `batch`.  Tiles target ~_TARGET_TILE_BYTES so input+output double buffers
    fit every generation's default scoped VMEM.
    """
    sublane = 8 * max(1, 4 // itemsize)           # 8 f32, 16 bf16/f16, 32 int8
    lane = 128
    rows_min = min(batch, sublane)
    row_bytes = cols * itemsize
    # ~512 B/row of padded VMEM taken by the (TB, 1) f32 scale block.
    eff_row_bytes = row_bytes + 512

    if cols > lane and rows_min * eff_row_bytes > _TARGET_TILE_BYTES:
        # Even the minimum layout-friendly row count blows the budget:
        # split the lane dimension into 128-aligned chunks.
        tc = (_TARGET_TILE_BYTES // (rows_min * itemsize)) // lane * lane
        tc = max(lane, min(tc, (cols // lane) * lane))
        tb = rows_min
    else:
        tc = cols                                  # full row is always legal
        rows = max(1, _TARGET_TILE_BYTES // eff_row_bytes)
        if rows >= batch:
            tb = batch                             # full batch dim is legal
        else:
            tb = max(sublane, (rows // sublane) * sublane)
            if tb >= batch:
                tb = batch
    return tb, tc


def _drop_path_kernel(scale_ref, x_ref, o_ref):
    # scale_ref: VMEM (TB, 1) float32 = mask_b / keep_prob (lane-broadcast here)
    # x_ref / o_ref: VMEM (TB, TC) tiles of x.dtype
    o_ref[...] = (x_ref[...] * scale_ref[...]).astype(o_ref.dtype)


def _drop_path_add_kernel(scale_ref, x_ref, res_ref, o_ref):
    # Fused residual + stochastic depth: out = residual + x * (mask/keep_prob).
    # Math promotes to f32 (scale is f32); a single cast back to o_ref.dtype.
    o_ref[...] = (res_ref[...] + x_ref[...] * scale_ref[...]).astype(o_ref.dtype)


def _run_scaled(kernel, scale2, tensors2, out_dtype):
    """Launch `kernel` over (B, C)-flattened tensors with a per-row f32 scale."""
    B, C = tensors2[0].shape
    itemsize = tensors2[0].dtype.itemsize
    tb, tc = _tile_sizes(B, C, itemsize)
    grid = (pl.cdiv(B, tb), pl.cdiv(C, tc))
    tile_spec = pl.BlockSpec((tb, tc), lambda b, c: (b, c))
    n_streamed = len(tensors2) + 1  # full-size inputs + the output
    return pl.pallas_call(
        kernel,
        out_shape=jax.ShapeDtypeStruct((B, C), out_dtype),
        grid=grid,
        in_specs=[pl.BlockSpec((tb, 1), lambda b, c: (b, 0))]   # f32 scale
                 + [tile_spec] * len(tensors2),
        out_specs=tile_spec,
        compiler_params=pltpu.CompilerParams(
            dimension_semantics=("parallel", "parallel")),
        cost_estimate=pl.CostEstimate(
            flops=len(tensors2) * B * C,
            transcendentals=0,
            bytes_accessed=n_streamed * B * C * itemsize + B * 4),
    )(scale2, *tensors2)


def _sample_scale(key, batch, keep_prob):
    # Per-sample Bernoulli(keep_prob) mask, exactly like the torch reference:
    # floor(keep_prob + uniform[0,1)).  Kept in float32; 1/keep_prob folded in
    # so the kernel does a single multiply per element.
    u = jax.random.uniform(key, (batch,), dtype=jnp.float32)
    return (jnp.floor(keep_prob + u) / keep_prob).reshape(batch, 1)


def drop_path(x, drop_prob: float = 0.0, training: bool = False, *, key=None):
    """Stochastic depth: drop the whole residual branch per sample."""
    if drop_prob == 0.0 or not training:
        return x
    if key is None:
        raise ValueError("drop_path requires a PRNG `key` when active")
    keep_prob = 1.0 - drop_prob
    B = x.shape[0]
    scale = _sample_scale(key, B, keep_prob)          # (B, 1) float32
    x2 = x.reshape(B, -1)                             # lane-dense layout
    out2 = _run_scaled(_drop_path_kernel, scale, [x2], x.dtype)
    return out2.reshape(x.shape)


def drop_path_add(x, residual, drop_prob: float = 0.0, training: bool = False,
                  *, key=None):
    """Fused `residual + drop_path(x)` — deletes one activation HBM round-trip."""
    if drop_prob == 0.0 or not training:
        return residual + x
    if key is None:
        raise ValueError("drop_path_add requires a PRNG `key` when active")
    keep_prob = 1.0 - drop_prob
    B = x.shape[0]
    scale = _sample_scale(key, B, keep_prob)
    x2 = x.reshape(B, -1)
    r2 = residual.reshape(B, -1)
    out2 = _run_scaled(_drop_path_add_kernel, scale, [x2, r2], x.dtype)
    return out2.reshape(x.shape)


class DropPath:
    """Drop paths (stochastic depth) per sample — Pallas TPU version."""

    def __init__(self, drop_prob=None):
        self.drop_prob = 0.0 if drop_prob is None else float(drop_prob)
        self.training = True

    def __call__(self, x, *, key=None):
        return drop_path(x, self.drop_prob, self.training, key=key)


if __name__ == "__main__":
    root = jax.random.PRNGKey(0)
    k_x, k_res, k_mask, k_xb = jax.random.split(root, 4)

    B, N, D = 2, 8, 128
    x = jax.random.normal(k_x, (B, N, D), dtype=jnp.float32)
    res = jax.random.normal(k_res, (B, N, D), dtype=jnp.float32)

    drop_prob = 0.5
    keep_prob = 1.0 - drop_prob

    # Pure-JAX reference with the identical mask draw (computed before any call).
    u = jax.random.uniform(k_mask, (B,), dtype=jnp.float32)
    mask = jnp.floor(keep_prob + u)
    ref = x / keep_prob * mask[:, None, None]

    module = DropPath(drop_prob=drop_prob)
    module.training = True
    out = jax.block_until_ready(module(x, key=k_mask))
    assert out.shape == x.shape and out.dtype == x.dtype
    assert jnp.allclose(out, ref, atol=1e-6, rtol=1e-6)

    # Fused residual + drop_path variant (the structural perf win).
    out_fused = jax.block_until_ready(
        drop_path_add(x, res, drop_prob, True, key=k_mask))
    assert jnp.allclose(out_fused, res + ref, atol=1e-6, rtol=1e-6)

    # bf16 path exercises the packed-sublane tile handling and f32-scale math.
    xb = jax.random.normal(k_xb, (4, 8, 256), dtype=jnp.bfloat16)
    ub = jax.random.uniform(k_mask, (4,), dtype=jnp.float32)
    maskb = jnp.floor(keep_prob + ub)
    refb = (xb.astype(jnp.float32) / keep_prob * maskb[:, None, None])
    outb = jax.block_until_ready(drop_path(xb, drop_prob, True, key=k_mask))
    assert outb.dtype == jnp.bfloat16
    assert jnp.allclose(outb.astype(jnp.float32), refb, atol=1e-2, rtol=1e-2)

    # Eval / drop_prob == 0 path is the identity.
    module.training = False
    out_eval = jax.block_until_ready(module(x, key=k_mask))
    assert jnp.array_equal(out_eval, x)

    print("KERNEL_OK")
</pallas_src>

<mosaic_0001>
module attributes {stable_mosaic.version = 11 : i64} {
  func.func @_drop_path_kernel(%arg0: i32, %arg1: i32, %arg2: memref<2x1xf32, #tpu.memory_space<vmem>>, %arg3: memref<2x1024xf32, #tpu.memory_space<vmem>>, %arg4: memref<2x1024xf32, #tpu.memory_space<vmem>>) attributes {dimension_semantics = [#tpu.dimension_semantics<parallel>, #tpu.dimension_semantics<parallel>], iteration_bounds = array<i64: 1, 1>, scalar_prefetch = 0 : i64, scratch_operands = 0 : i64, tpu.core_type = #tpu.core_type<tc>, window_params = [{transform_indices = @transform_0, window_bounds = array<i64: 2, 1>}, {transform_indices = @transform_1, window_bounds = array<i64: 2, 1024>}, {transform_indices = @transform_2, window_bounds = array<i64: 2, 1024>}]} {
    %c0 = arith.constant 0 : index
    %c0_0 = arith.constant 0 : index
    %0 = vector.load %arg3[%c0, %c0_0] : memref<2x1024xf32, #tpu.memory_space<vmem>>, vector<2x1024xf32>
    %c0_1 = arith.constant 0 : index
    %c0_2 = arith.constant 0 : index
    %1 = vector.load %arg2[%c0_1, %c0_2] : memref<2x1xf32, #tpu.memory_space<vmem>>, vector<2x1xf32>
    %2 = vector.broadcast %1 : vector<2x1xf32> to vector<2x1024xf32>
    %3 = arith.mulf %0, %2 : vector<2x1024xf32>
    %c0_3 = arith.constant 0 : index
    %c0_4 = arith.constant 0 : index
    %4 = vector.load %arg4[%c0_3, %c0_4] : memref<2x1024xf32, #tpu.memory_space<vmem>>, vector<2x1024xf32>
    tpu.vector_store %arg4[%c0_3, %c0_4], %3 {strides = array<i32>} : memref<2x1024xf32, #tpu.memory_space<vmem>>, vector<2x1024xf32>,
    return
  }
  func.func @transform_0(%arg0: i32, %arg1: i32) -> (i32, i32) {
    %c0_i32 = arith.constant 0 : i32
    %c0_i32_0 = arith.constant 0 : i32
    return %arg0, %c0_i32 : i32, i32
  }
  func.func @transform_1(%arg0: i32, %arg1: i32) -> (i32, i32) {
    %c0_i32 = arith.constant 0 : i32
    return %arg0, %arg1 : i32, i32
  }
  func.func @transform_2(%arg0: i32, %arg1: i32) -> (i32, i32) {
    %c0_i32 = arith.constant 0 : i32
    return %arg0, %arg1 : i32, i32
  }
}

</mosaic_0001>

<llo_original>
// kernel: tpu_custom_call.1
$region0: #{tpu_custom_call.1}
  #allocation0 [shape = 'u32[]', space=smem, size = 0x4, offset = 0x4, fixed_abs, tag = 'smem constant byte address 0x4 - core index']
  #allocation1 [shape = 'u32[144,128]{1,0:T(1,128)}', space=vmem, size = 0x12000, scoped, tag = 'internal scratch']
  %s0 = inlined_call_operand.vmem [shape: f32[2,1], index: 0, kind: input, shape index: {}]
  %s1 = inlined_call_operand.hbm [shape: f32[2,1024], index: 1, kind: input, shape index: {}]
  %s2 = inlined_call_operand.hbm [shape: f32[2,1024], index: 2, kind: output, shape index: {}]
  %s3 = sld [smem:[#allocation0]]
  $region22: #{tpu_custom_call.1} parent=0
    _
  %s5 = ssub.s32 1, %s3
  %s6 = scalar_select 0, %s5, %s3
  $region1: #{tpu_custom_call.1} parent=0
    #allocation2 [shape = 'u8[8192]{0}', space=vmem, size = 0x2000, scoped, tag = 'input window, operand 1, single buffered']
    #allocation3 [shape = 's32[1]{0}', space=sflag, size = 0x4, scoped, tag = 'scoped memory for tpu_custom_call.1']
    #allocation4 [shape = 's32[1]{0}', space=sflag, size = 0x4, scoped, tag = 'scoped memory for tpu_custom_call.1']
    #allocation5 [shape = 'u8[8192]{0}', space=vmem, size = 0x2000, scoped, tag = 'output window, operand 0, single buffered']
    %7 = vsyncpa [#allocation3], 0
    %8 = vsyncpa [#allocation4], 0
    // Predicated region
    $region2: #{tpu_custom_call.1} parent=1 // pred_check
      _
    $region3: #{tpu_custom_call.1} parent=1 // pred_check_branch
      %10 = sbr.rel (0) target = $region5
    $region4: #{tpu_custom_call.1} parent=1 // pred_region
      _
    $region5: #{tpu_custom_call.1} parent=1 // pred_fallthru
      _
    // Predicated region
    $region6: #{tpu_custom_call.1} parent=1 // pred_check
      _
    $region7: #{tpu_custom_call.1} parent=1 // pred_check_branch
      %12 = sbr.rel (0) target = $region9
    $region8: #{tpu_custom_call.1} parent=1 // pred_region
      %s14 = ssub.s32 256, 256
      %15 = vsyncadd [#allocation3], %s14
      %s17 = sshll.u32 [#allocation2], 4
      %s18 = int_to_ptr.vmem [resolvable:$true] %s17
      %20 = dma.hbm_to_vmem [thread:$0]  %s1, 256, %s18, [#allocation3]
    $region9: #{tpu_custom_call.1} parent=1 // pred_fallthru
      _
    // Predicated region
    $region10: #{tpu_custom_call.1} parent=1 // pred_check
      _
    $region11: #{tpu_custom_call.1} parent=1 // pred_check_branch
      %22 = sbr.rel (0) target = $region13
    $region12: #{tpu_custom_call.1} parent=1 // pred_region
      %23 = dma.done [#allocation3], 256
    $region13: #{tpu_custom_call.1} parent=1 // pred_fallthru
      _
    %v24 = vld [vmem:[#allocation2] sm:$0xff]
    %v25 = vld [vmem:[#allocation2 + $0x8] sm:$0xff]
    %v26 = vld [vmem:[%s0] sm:$0x3]
    %28 = vset.pattern.permute.xlu0 0
    %29 = vperm.xlu0 %28, %v26
    %v30 = vpop.permute.xlu0 %29
    %v32 = vunpack.c.l.s4 269488144
    %v33 = vunpack.c.0.s8 %v32
    %v34 = vlaneseq
    %v35 = vshrl.u32 %v34, 7
    %v36 = vsub.s32 %v33, %v35
    %v37 = vrot.slane %v30, %v36
    %v39 = vmul.f32 %v24, %v37
    %v40 = vmul.f32 %v25, %v37
    %41 = vst [vmem:[#allocation5] sm:$0xff] %v39
    %42 = vst [vmem:[#allocation5 + $0x8] sm:$0xff] %v40
    // Predicated region
    $region14: #{tpu_custom_call.1} parent=1 // pred_check
      _
    $region15: #{tpu_custom_call.1} parent=1 // pred_check_branch
      %44 = sbr.rel (0) target = $region17
    $region16: #{tpu_custom_call.1} parent=1 // pred_region
      %s46 = ssub.s32 256, 256
      %47 = vsyncadd [#allocation4], %s46
      %s49 = sshll.u32 [#allocation5], 4
      %s50 = int_to_ptr.vmem [resolvable:$true] %s49
      %52 = dma.vmem_to_hbm [thread:$0]  %s50, 256, %s2, [#allocation4]
    $region17: #{tpu_custom_call.1} parent=1 // pred_fallthru
      _
    // Predicated region
    $region18: #{tpu_custom_call.1} parent=1 // pred_check
      _
    $region19: #{tpu_custom_call.1} parent=1 // pred_check_branch
      %54 = sbr.rel (0) target = $region21
    $region20: #{tpu_custom_call.1} parent=1 // pred_region
      %55 = dma.done [#allocation4], 256
    $region21: #{tpu_custom_call.1} parent=1 // pred_fallthru
      _
    %56 = vsyncpa [#allocation3], 1
    %57 = vsyncpa [#allocation4], 1

</llo_original>
